<compile_context>
chip_gen: v7x
topology: tpu7x:2x2x1
jax: 0.10.0
libtpu: 0.0.40
codegen_flags: <defaults>
</compile_context>

<pallas_src>
import functools

import jax
import jax.numpy as jnp
from jax.experimental import pallas as pl
from jax.experimental.pallas import tpu as pltpu


def _round_up(x, m):
    return ((x + m - 1) // m) * m


def _cdiv(a, b):
    return (a + b - 1) // b


# ----------------------------------------------------------------------------
# Fused Pallas kernel — one grid step == one block of Bb batch elements.
# ----------------------------------------------------------------------------
def _mran_fused_kernel(x_ref, wenc_ref, emb_ref, wdec_ref, wproj_ref, mask_ref,
                       o_ref, h_scr, *, n_dec, bb, t, l):
    """
    x_ref    : (Bb*T, KP)          bf16  concat(app,motion,hand), K padded to 128
    wenc_ref : (KP, DP)            bf16  stacked [Wa; Wm; Wh], zero-padded
    emb_ref  : (Bb*L, DP)          f32   token-emb + category-emb, zero-padded
    wdec_ref : (n_dec_eff, DP, DP) bf16  decoder weights
    wproj_ref: (DP, VP)            bf16  tag_proj weight
    mask_ref : (1, VP)             f32   0 for valid vocab cols, -1e30 padded
    o_ref    : (n_hidden*Bb*L, VP) f32   log-probs (padded cols are garbage)
    h_scr    : (n_hidden*Bb*L, DP) bf16  scratch holding all hidden states
    """
    bl = bb * l
    dp = wenc_ref.shape[1]

    # ---- encoder: joint = tanh(X @ W_enc), M = Bb*T -------------------------
    joint = jnp.tanh(
        jnp.dot(x_ref[...], wenc_ref[...],
                preferred_element_type=jnp.float32))           # (Bb*T, DP) f32

    # ---- decoder stand-in: per-batch mean-pooled context --------------------
    ctx = jnp.mean(joint.reshape(bb, t, dp), axis=1)           # (Bb, DP) f32
    h = emb_ref[...].reshape(bb, l, dp) + ctx[:, None, :]      # (Bb, L, DP)
    h = h.reshape(bl, dp)                                      # f32
    h_scr[pl.ds(0, bl), :] = h.astype(h_scr.dtype)

    for i in range(n_dec):
        h = jnp.tanh(
            jnp.dot(h_scr[pl.ds(i * bl, bl), :], wdec_ref[i],
                    preferred_element_type=jnp.float32))       # f32
        h_scr[pl.ds((i + 1) * bl, bl), :] = h.astype(h_scr.dtype)

    # ---- tag_proj + log_softmax over ALL hidden states in ONE matmul --------
    logits = jnp.dot(h_scr[...], wproj_ref[...],
                     preferred_element_type=jnp.float32)       # (NH*Bb*L, VP)
    logits = logits + mask_ref[...]                            # mask padded cols
    m = jnp.max(logits, axis=-1, keepdims=True)
    z = logits - m
    lse = jnp.log(jnp.sum(jnp.exp(z), axis=-1, keepdims=True))
    o_ref[...] = (z - lse).astype(o_ref.dtype)


def mran_fused(x_flat, w_enc, emb_flat, w_dec, w_proj, mask, *,
               bb, t, l, n_dec, n_blocks):
    """x_flat (Bpad*T, KP) bf16, w_enc (KP, DP) bf16, emb_flat (Bpad*L, DP) f32,
    w_dec (n_dec_eff, DP, DP) bf16, w_proj (DP, VP) bf16, mask (1, VP) f32
    -> (n_blocks*n_hidden*Bb*L, VP) f32 log-probs (padded vocab cols junk)."""
    KP = x_flat.shape[-1]
    DP = w_enc.shape[-1]
    VP = w_proj.shape[-1]
    n_dec_eff = w_dec.shape[0]
    n_hidden = n_dec + 1

    kernel = functools.partial(_mran_fused_kernel,
                               n_dec=n_dec, bb=bb, t=t, l=l)

    # Explicit VMEM budget: double-buffered inputs/outputs + scratch + headroom.
    in_b = (bb * t * KP * 2 + bb * l * DP * 4 + KP * DP * 2
            + n_dec_eff * DP * DP * 2 + DP * VP * 2 + VP * 4)
    out_b = n_hidden * bb * l * VP * 4
    scr_b = n_hidden * bb * l * DP * 2
    vmem_limit = int(min(max(2 * (in_b + out_b) + scr_b + (4 << 20), 16 << 20),
                         64 << 20))

    return pl.pallas_call(
        kernel,
        out_shape=jax.ShapeDtypeStruct((n_blocks * n_hidden * bb * l, VP),
                                       jnp.float32),
        grid=(n_blocks,),
        in_specs=[
            pl.BlockSpec((bb * t, KP), lambda b: (b, 0)),
            pl.BlockSpec((KP, DP), lambda b: (0, 0)),
            pl.BlockSpec((bb * l, DP), lambda b: (b, 0)),
            pl.BlockSpec((n_dec_eff, DP, DP), lambda b: (0, 0, 0)),
            pl.BlockSpec((DP, VP), lambda b: (0, 0)),
            pl.BlockSpec((1, VP), lambda b: (0, 0)),
        ],
        out_specs=pl.BlockSpec((n_hidden * bb * l, VP), lambda b: (b, 0)),
        scratch_shapes=[pltpu.VMEM((n_hidden * bb * l, DP), jnp.bfloat16)],
        compiler_params=pltpu.CompilerParams(
            dimension_semantics=("parallel",),    # shards blocks over 2 TCs on v7x
            vmem_limit_bytes=vmem_limit),
    )(x_flat, w_enc, emb_flat, w_dec, w_proj, mask)


# ----------------------------------------------------------------------------
# Model (parameters built deterministically in-script)
# ----------------------------------------------------------------------------
class Cfg:
    model_dim = 32
    vocab_size = 48
    app_dim = 32
    motion_dim = 32
    hand_dim = 32
    num_categories = 4
    num_decoder_layers = 2


def init_params(key, cfg):
    ks = jax.random.split(key, 8)
    s = lambda k, shape, fan_in: (jax.random.normal(k, shape, jnp.float32)
                                  / jnp.sqrt(jnp.float32(fan_in)))
    return {
        "enc_wa": s(ks[0], (cfg.app_dim, cfg.model_dim), cfg.app_dim),
        "enc_wm": s(ks[1], (cfg.motion_dim, cfg.model_dim), cfg.motion_dim),
        "enc_wh": s(ks[2], (cfg.hand_dim, cfg.model_dim), cfg.hand_dim),
        "tok_emb": s(ks[3], (cfg.vocab_size, cfg.model_dim), cfg.model_dim),
        "cat_emb": s(ks[4], (cfg.num_categories, cfg.model_dim), cfg.model_dim),
        "dec_w": [s(ks[5 + i], (cfg.model_dim, cfg.model_dim), cfg.model_dim)
                  for i in range(cfg.num_decoder_layers - 1)],
        # nn.Linear(model_dim, vocab_size, bias=False): apply as hidden @ (D, V)
        "tag_proj_w": s(ks[7], (cfg.model_dim, cfg.vocab_size), cfg.model_dim),
    }


def mran_forward(params, cfg, app_feat, motion_feat, hand_feat,
                 tag_tokens, category):
    B, T, _ = app_feat.shape

    # tag_tokens = tag_tokens[:, :-1]
    tag_tokens = tag_tokens[:, :-1]
    L = tag_tokens.shape[1]

    D, V = cfg.model_dim, cfg.vocab_size
    DP = _round_up(max(D, 128), 128)     # lane-dense feature dim
    VP = _round_up(max(V, 128), 128)     # lane-dense vocab dim

    # ---- batch blocking: target Bb*T ~ 128 when B allows; keep >=2 blocks
    # for v7x's two TensorCores once there is enough work to split. ----------
    Bb = max(1, min(B, _cdiv(128, T)))
    if _cdiv(B, Bb) == 1 and B > 1 and B * T >= 256:
        Bb = _cdiv(B, 2)
    n_blocks = _cdiv(B, Bb)
    B_pad = n_blocks * Bb

    bf = jnp.bfloat16

    # ---- encoder inputs: concat app/motion/hand along K, pad, flatten -------
    # TODO(synk): real Joint_Representation code not provided; stand-in is a
    # fused bias-free linear projection + tanh (single MXU matmul in-kernel).
    x_cat = jnp.concatenate([app_feat, motion_feat, hand_feat], axis=-1)
    K = x_cat.shape[-1]
    KP = _round_up(max(K, 128), 128)
    x_cat = jnp.pad(x_cat, ((0, B_pad - B), (0, 0), (0, KP - K)))
    x_flat = x_cat.reshape(B_pad * T, KP).astype(bf)                 # (B*T, KP)

    w_enc = jnp.concatenate(
        [params["enc_wa"], params["enc_wm"], params["enc_wh"]], axis=0)  # (K,D)
    w_enc = jnp.pad(w_enc, ((0, KP - K), (0, DP - D))).astype(bf)    # (KP,DP)

    # ---- decoder stand-in front end (embedding gathers stay in XLA) ---------
    # TODO(synk): real Decoder code not provided; stand-in is token embedding +
    # mean-pooled joint context + category embedding, per-layer tanh-linear.
    embs = jnp.take(params["tok_emb"], tag_tokens, axis=0)           # (B,L,D)
    cat = jnp.take(params["cat_emb"], category, axis=0)[:, None, :]  # (B,1,D)
    emb_in = jnp.pad(embs + cat, ((0, B_pad - B), (0, 0), (0, DP - D)))
    emb_flat = emb_in.reshape(B_pad * L, DP).astype(jnp.float32)     # (B*L,DP)

    n_dec = len(params["dec_w"])
    if n_dec > 0:
        w_dec = jnp.stack(
            [jnp.pad(w, ((0, DP - D), (0, DP - D))) for w in params["dec_w"]],
            axis=0).astype(bf)                                       # (n,DP,DP)
    else:
        w_dec = jnp.zeros((1, DP, DP), bf)       # dummy (never read in-kernel)
    w_proj = jnp.pad(params["tag_proj_w"],
                     ((0, DP - D), (0, VP - V))).astype(bf)          # (DP,VP)

    # additive vocab-padding mask, hoisted out of the kernel
    mask = jnp.where(jnp.arange(VP) < V, 0.0, -1e30
                     ).astype(jnp.float32).reshape(1, VP)

    # ---- single fused Pallas kernel ------------------------------------------
    out = mran_fused(x_flat, w_enc, emb_flat, w_dec, w_proj, mask,
                     bb=Bb, t=T, l=L, n_dec=n_dec, n_blocks=n_blocks)

    n_hidden = n_dec + 1
    out = out.reshape(n_blocks, n_hidden, Bb, L, VP)[..., :V]
    out = jnp.moveaxis(out, 1, 0).reshape(n_hidden, B_pad, L, V)[:, :B]
    return {"tgt_word_logprobs": [out[i] for i in range(n_hidden)]}


# ----------------------------------------------------------------------------
# Pure-JAX reference of the same stand-in forward (bf16-matmul mirrored)
# ----------------------------------------------------------------------------
def mran_reference(params, cfg, app_feat, motion_feat, hand_feat,
                   tag_tokens, category):
    bf = jnp.bfloat16
    tag_tokens = tag_tokens[:, :-1]
    x = jnp.concatenate([app_feat, motion_feat, hand_feat], axis=-1).astype(bf)
    w_enc = jnp.concatenate([params["enc_wa"], params["enc_wm"],
                             params["enc_wh"]], axis=0).astype(bf)
    joint = jnp.tanh(jnp.einsum("btk,kd->btd", x, w_enc,
                                preferred_element_type=jnp.float32))
    embs = jnp.take(params["tok_emb"], tag_tokens, axis=0)
    cat = jnp.take(params["cat_emb"], category, axis=0)[:, None, :]
    ctx = jnp.mean(joint, axis=1, keepdims=True)
    h = embs + cat + ctx
    hs = [h]
    for w in params["dec_w"]:
        h = jnp.tanh(jnp.einsum("bld,de->ble", h.astype(bf), w.astype(bf),
                                preferred_element_type=jnp.float32))
        hs.append(h)
    wp = params["tag_proj_w"].astype(bf)
    out = []
    for item in hs:
        logits = jnp.einsum("bld,dv->blv", item.astype(bf), wp,
                            preferred_element_type=jnp.float32)
        out.append(jax.nn.log_softmax(logits, axis=-1))
    return out


# ----------------------------------------------------------------------------
if __name__ == "__main__":
    cfg = Cfg()
    key = jax.random.PRNGKey(0)
    kp, ka, km, kh, kt, kc = jax.random.split(key, 6)

    B, T, Lp1 = 2, 8, 9  # tag_tokens has L+1 tokens; forward drops the last
    params = init_params(kp, cfg)

    app_feat = jax.random.normal(ka, (B, T, cfg.app_dim), jnp.float32)
    motion_feat = jax.random.normal(km, (B, T, cfg.motion_dim), jnp.float32)
    hand_feat = jax.random.normal(kh, (B, T, cfg.hand_dim), jnp.float32)
    tag_tokens = jax.random.randint(kt, (B, Lp1), 0, cfg.vocab_size, jnp.int32)
    category = jax.random.randint(kc, (B,), 0, cfg.num_categories, jnp.int32)

    fwd = jax.jit(mran_forward, static_argnums=1)
    out = fwd(params, cfg, app_feat, motion_feat, hand_feat,
              tag_tokens, category)
    for lp in out["tgt_word_logprobs"]:
        jax.block_until_ready(lp)

    # sanity 1: each row of log-probs sums (in prob space) to ~1
    probs_sum = jnp.exp(out["tgt_word_logprobs"][0]).sum(-1)
    assert jnp.allclose(probs_sum, 1.0, atol=1e-4), probs_sum

    # sanity 2: fused padded bf16-MXU kernel matches the pure-JAX reference
    ref = mran_reference(params, cfg, app_feat, motion_feat, hand_feat,
                         tag_tokens, category)
    for got, want in zip(out["tgt_word_logprobs"], ref):
        err = jnp.max(jnp.abs(got - want))
        assert err < 5e-3, err

    print("KERNEL_OK")
</pallas_src>

<mosaic_0001>
module attributes {stable_mosaic.version = 11 : i64} {
  func.func @_mran_fused_kernel(%arg0: i32, %arg1: memref<16x128xbf16, #tpu.memory_space<vmem>>, %arg2: memref<128x128xbf16, #tpu.memory_space<vmem>>, %arg3: memref<16x128xf32, #tpu.memory_space<vmem>>, %arg4: memref<1x128x128xbf16, #tpu.memory_space<vmem>>, %arg5: memref<128x128xbf16, #tpu.memory_space<vmem>>, %arg6: memref<1x128xf32, #tpu.memory_space<vmem>>, %arg7: memref<32x128xf32, #tpu.memory_space<vmem>>, %arg8: memref<32x128xbf16, #tpu.memory_space<vmem>>) attributes {dimension_semantics = [#tpu.dimension_semantics<parallel>], iteration_bounds = array<i64: 1>, scalar_prefetch = 0 : i64, scratch_operands = 1 : i64, tpu.core_type = #tpu.core_type<tc>, window_params = [{transform_indices = @transform_0, window_bounds = array<i64: 16, 128>}, {pipeline_mode = #tpu.pipeline_mode<synchronous>, transform_indices = @transform_1, window_bounds = array<i64: 128, 128>}, {transform_indices = @transform_2, window_bounds = array<i64: 16, 128>}, {pipeline_mode = #tpu.pipeline_mode<synchronous>, transform_indices = @transform_3, window_bounds = array<i64: 1, 128, 128>}, {pipeline_mode = #tpu.pipeline_mode<synchronous>, transform_indices = @transform_4, window_bounds = array<i64: 128, 128>}, {pipeline_mode = #tpu.pipeline_mode<synchronous>, transform_indices = @transform_5, window_bounds = array<i64: 1, 128>}, {transform_indices = @transform_6, window_bounds = array<i64: 32, 128>}]} {
    %c0 = arith.constant 0 : index
    %c0_0 = arith.constant 0 : index
    %0 = vector.load %arg1[%c0, %c0_0] : memref<16x128xbf16, #tpu.memory_space<vmem>>, vector<16x128xbf16>
    %c0_1 = arith.constant 0 : index
    %c0_2 = arith.constant 0 : index
    %1 = vector.load %arg2[%c0_1, %c0_2] : memref<128x128xbf16, #tpu.memory_space<vmem>>, vector<128x128xbf16>
    %cst = arith.constant dense<0.000000e+00> : vector<16x128xf32>
    %2 = tpu.matmul %0, %1, %cst {dimension_numbers = #tpu.dot_dimension_numbers<[1], [0], [0], [1], [0, 0, 1, 1], [], []>} : vector<16x128xbf16>, vector<128x128xbf16>, vector<16x128xf32> -> vector<16x128xf32>
    %3 = math.tanh %2 : vector<16x128xf32>
    %4 = vector.shape_cast %3 : vector<16x128xf32> to vector<2x8x128xf32>
    %cst_3 = arith.constant dense<0.000000e+00> : vector<2x128xf32>
    %5 = vector.multi_reduction <add>, %4, %cst_3 [1] : vector<2x8x128xf32> to vector<2x128xf32>
    %cst_4 = arith.constant 8.000000e+00 : f32
    %6 = vector.broadcast %cst_4 : f32 to vector<2x128xf32>
    %7 = arith.divf %5, %6 : vector<2x128xf32>
    %c0_5 = arith.constant 0 : index
    %c0_6 = arith.constant 0 : index
    %8 = vector.load %arg3[%c0_5, %c0_6] : memref<16x128xf32, #tpu.memory_space<vmem>>, vector<16x128xf32>
    %9 = vector.shape_cast %8 : vector<16x128xf32> to vector<2x8x128xf32>
    %10 = vector.shape_cast %7 : vector<2x128xf32> to vector<2x1x128xf32>
    %11 = vector.broadcast %10 : vector<2x1x128xf32> to vector<2x8x128xf32>
    %12 = arith.addf %9, %11 : vector<2x8x128xf32>
    %13 = vector.shape_cast %12 : vector<2x8x128xf32> to vector<16x128xf32>
    %14 = arith.truncf %13 : vector<16x128xf32> to vector<16x128xbf16>
    %c0_7 = arith.constant 0 : index
    %c0_8 = arith.constant 0 : index
    %15 = vector.load %arg8[%c0_7, %c0_8] : memref<32x128xbf16, #tpu.memory_space<vmem>>, vector<16x128xbf16>
    tpu.vector_store %arg8[%c0_7, %c0_8], %14 {strides = array<i32>} : memref<32x128xbf16, #tpu.memory_space<vmem>>, vector<16x128xbf16>,
    %c0_9 = arith.constant 0 : index
    %c0_10 = arith.constant 0 : index
    %16 = vector.load %arg8[%c0_9, %c0_10] : memref<32x128xbf16, #tpu.memory_space<vmem>>, vector<16x128xbf16>
    %c0_11 = arith.constant 0 : index
    %c0_12 = arith.constant 0 : index
    %c0_13 = arith.constant 0 : index
    %17 = vector.load %arg4[%c0_11, %c0_12, %c0_13] : memref<1x128x128xbf16, #tpu.memory_space<vmem>>, vector<1x128x128xbf16>
    %18 = vector.shape_cast %17 : vector<1x128x128xbf16> to vector<128x128xbf16>
    %cst_14 = arith.constant dense<0.000000e+00> : vector<16x128xf32>
    %19 = tpu.matmul %16, %18, %cst_14 {dimension_numbers = #tpu.dot_dimension_numbers<[1], [0], [0], [1], [0, 0, 1, 1], [], []>} : vector<16x128xbf16>, vector<128x128xbf16>, vector<16x128xf32> -> vector<16x128xf32>
    %20 = math.tanh %19 : vector<16x128xf32>
    %21 = arith.truncf %20 : vector<16x128xf32> to vector<16x128xbf16>
    %c16 = arith.constant 16 : index
    %c0_15 = arith.constant 0 : index
    %22 = vector.load %arg8[%c16, %c0_15] : memref<32x128xbf16, #tpu.memory_space<vmem>>, vector<16x128xbf16>
    tpu.vector_store %arg8[%c16, %c0_15], %21 {strides = array<i32>} : memref<32x128xbf16, #tpu.memory_space<vmem>>, vector<16x128xbf16>,
    %c0_16 = arith.constant 0 : index
    %c0_17 = arith.constant 0 : index
    %23 = vector.load %arg8[%c0_16, %c0_17] : memref<32x128xbf16, #tpu.memory_space<vmem>>, vector<32x128xbf16>
    %c0_18 = arith.constant 0 : index
    %c0_19 = arith.constant 0 : index
    %24 = vector.load %arg5[%c0_18, %c0_19] : memref<128x128xbf16, #tpu.memory_space<vmem>>, vector<128x128xbf16>
    %cst_20 = arith.constant dense<0.000000e+00> : vector<32x128xf32>
    %25 = tpu.matmul %23, %24, %cst_20 {dimension_numbers = #tpu.dot_dimension_numbers<[1], [0], [0], [1], [0, 0, 1, 1], [], []>} : vector<32x128xbf16>, vector<128x128xbf16>, vector<32x128xf32> -> vector<32x128xf32>
    %c0_21 = arith.constant 0 : index
    %c0_22 = arith.constant 0 : index
    %26 = vector.load %arg6[%c0_21, %c0_22] : memref<1x128xf32, #tpu.memory_space<vmem>>, vector<1x128xf32>
    %27 = vector.broadcast %26 : vector<1x128xf32> to vector<32x128xf32>
    %28 = arith.addf %25, %27 : vector<32x128xf32>
    %cst_23 = arith.constant dense<0xFF800000> : vector<32xf32>
    %29 = vector.multi_reduction <maximumf>, %28, %cst_23 [1] : vector<32x128xf32> to vector<32xf32>
    %30 = vector.shape_cast %29 : vector<32xf32> to vector<32x1xf32>
    %31 = vector.broadcast %30 : vector<32x1xf32> to vector<32x128xf32>
    %32 = arith.subf %28, %31 : vector<32x128xf32>
    %33 = math.exp %32 : vector<32x128xf32>
    %cst_24 = arith.constant dense<0.000000e+00> : vector<32xf32>
    %34 = vector.multi_reduction <add>, %33, %cst_24 [1] : vector<32x128xf32> to vector<32xf32>
    %35 = vector.shape_cast %34 : vector<32xf32> to vector<32x1xf32>
    %36 = math.log %35 : vector<32x1xf32>
    %37 = vector.broadcast %36 : vector<32x1xf32> to vector<32x128xf32>
    %38 = arith.subf %32, %37 : vector<32x128xf32>
    %c0_25 = arith.constant 0 : index
    %c0_26 = arith.constant 0 : index
    %39 = vector.load %arg7[%c0_25, %c0_26] : memref<32x128xf32, #tpu.memory_space<vmem>>, vector<32x128xf32>
    tpu.vector_store %arg7[%c0_25, %c0_26], %38 {strides = array<i32>} : memref<32x128xf32, #tpu.memory_space<vmem>>, vector<32x128xf32>,
    return
  }
  func.func @transform_0(%arg0: i32) -> (i32, i32) {
    %c0_i32 = arith.constant 0 : i32
    %c0_i32_0 = arith.constant 0 : i32
    return %arg0, %c0_i32 : i32, i32
  }
  func.func @transform_1(%arg0: i32) -> (i32, i32) {
    %c0_i32 = arith.constant 0 : i32
    %c0_i32_0 = arith.constant 0 : i32
    %c0_i32_1 = arith.constant 0 : i32
    return %c0_i32, %c0_i32_0 : i32, i32
  }
  func.func @transform_2(%arg0: i32) -> (i32, i32) {
    %c0_i32 = arith.constant 0 : i32
    %c0_i32_0 = arith.constant 0 : i32
    return %arg0, %c0_i32 : i32, i32
  }
  func.func @transform_3(%arg0: i32) -> (i32, i32, i32) {
    %c0_i32 = arith.constant 0 : i32
    %c0_i32_0 = arith.constant 0 : i32
    %c0_i32_1 = arith.constant 0 : i32
    %c0_i32_2 = arith.constant 0 : i32
    return %c0_i32, %c0_i32_0, %c0_i32_1 : i32, i32, i32
  }
  func.func @transform_4(%arg0: i32) -> (i32, i32) {
    %c0_i32 = arith.constant 0 : i32
    %c0_i32_0 = arith.constant 0 : i32
    %c0_i32_1 = arith.constant 0 : i32
    return %c0_i32, %c0_i32_0 : i32, i32
  }
  func.func @transform_5(%arg0: i32) -> (i32, i32) {
    %c0_i32 = arith.constant 0 : i32
    %c0_i32_0 = arith.constant 0 : i32
    %c0_i32_1 = arith.constant 0 : i32
    return %c0_i32, %c0_i32_0 : i32, i32
  }
  func.func @transform_6(%arg0: i32) -> (i32, i32) {
    %c0_i32 = arith.constant 0 : i32
    %c0_i32_0 = arith.constant 0 : i32
    return %arg0, %c0_i32 : i32, i32
  }
}

</mosaic_0001>

<llo_original>
// kernel: mran_forward.1
$region0: #{mran_forward.1}
  #allocation0 [shape = 'u32[]', space=smem, size = 0x4, offset = 0x4, fixed_abs, tag = 'smem constant byte address 0x4 - core index']
  #allocation1 [shape = 'u32[144,128]{1,0:T(1,128)}', space=vmem, size = 0x12000, scoped, tag = 'internal scratch']
  #allocation2 [shape = 'bf16[32,128]{1,0:T(16,128)(2,1)}', space=vmem, size = 0x2000, scoped, tag = 'scratch operand']
  %s0 = inlined_call_operand.vmem [shape: bf16[16,128], index: 0, kind: input, shape index: {}]
  %s1 = inlined_call_operand.vmem [shape: bf16[128,128], index: 1, kind: input, shape index: {}]
  %s2 = inlined_call_operand.vmem [shape: f32[16,128], index: 2, kind: input, shape index: {}]
  %s3 = inlined_call_operand.vmem [shape: bf16[1,128,128], index: 3, kind: input, shape index: {}]
  %s4 = inlined_call_operand.vmem [shape: bf16[128,128], index: 4, kind: input, shape index: {}]
  %s5 = inlined_call_operand.vmem [shape: f32[1,128], index: 5, kind: input, shape index: {}]
  %s6 = inlined_call_operand.vmem [shape: f32[32,128], index: 6, kind: output, shape index: {}]
  %s7 = sld [smem:[#allocation0]]
  $region34: #{mran_forward.1} parent=0
    _
  %s9 = ssub.s32 1, %s7
  %s10 = scalar_select 0, %s9, %s7
  // Predicated region
  $region2: #{mran_forward.1} parent=0 // pred_check
    _
  $region3: #{mran_forward.1} parent=0 // pred_check_branch
    %12 = sbr.rel (0) target = $region5
  $region4: #{mran_forward.1} parent=0 // pred_region
    _
  $region5: #{mran_forward.1} parent=0 // pred_fallthru
    _
  // Predicated region
  $region6: #{mran_forward.1} parent=0 // pred_check
    _
  $region7: #{mran_forward.1} parent=0 // pred_check_branch
    %14 = sbr.rel (0) target = $region9
  $region8: #{mran_forward.1} parent=0 // pred_region
    _
  $region9: #{mran_forward.1} parent=0 // pred_fallthru
    _
  // Predicated region
  $region10: #{mran_forward.1} parent=0 // pred_check
    _
  $region11: #{mran_forward.1} parent=0 // pred_check_branch
    %16 = sbr.rel (0) target = $region13
  $region12: #{mran_forward.1} parent=0 // pred_region
    _
  $region13: #{mran_forward.1} parent=0 // pred_fallthru
    _
  // Predicated region
  $region14: #{mran_forward.1} parent=0 // pred_check
    _
  $region15: #{mran_forward.1} parent=0 // pred_check_branch
    %18 = sbr.rel (0) target = $region17
  $region16: #{mran_forward.1} parent=0 // pred_region
    _
  $region17: #{mran_forward.1} parent=0 // pred_fallthru
    _
  // Predicated region
  $region18: #{mran_forward.1} parent=0 // pred_check
    _
  $region19: #{mran_forward.1} parent=0 // pred_check_branch
    %20 = sbr.rel (0) target = $region21
  $region20: #{mran_forward.1} parent=0 // pred_region
    _
  $region21: #{mran_forward.1} parent=0 // pred_fallthru
    _
  // Predicated region
  $region22: #{mran_forward.1} parent=0 // pred_check
    _
  $region23: #{mran_forward.1} parent=0 // pred_check_branch
    %22 = sbr.rel (0) target = $region25
  $region24: #{mran_forward.1} parent=0 // pred_region
    _
  $region25: #{mran_forward.1} parent=0 // pred_fallthru
    _
  %v24 = vld [vmem:[%s0] sm:$0xf]
  %v25 = vld [vmem:[%s0 + $0x4] sm:$0xf]
  %v26 = vld [vmem:[%s1] sm:$0xf]
  %v27 = vld [vmem:[%s1 + $0x4] sm:$0xf]
  %v28 = vld [vmem:[%s1 + $0x8] sm:$0xf]
  %v29 = vld [vmem:[%s1 + $0xc] sm:$0xf]
  %v30 = vld [vmem:[%s1 + $0x10] sm:$0xf]
  %v31 = vld [vmem:[%s1 + $0x14] sm:$0xf]
  %v32 = vld [vmem:[%s1 + $0x18] sm:$0xf]
  %v33 = vld [vmem:[%s1 + $0x1c] sm:$0xf]
  %v34 = vld [vmem:[%s1 + $0x20] sm:$0xf]
  %v35 = vld [vmem:[%s1 + $0x24] sm:$0xf]
  %v36 = vld [vmem:[%s1 + $0x28] sm:$0xf]
  %v37 = vld [vmem:[%s1 + $0x2c] sm:$0xf]
  %v38 = vld [vmem:[%s1 + $0x30] sm:$0xf]
  %v39 = vld [vmem:[%s1 + $0x34] sm:$0xf]
  %v40 = vld [vmem:[%s1 + $0x38] sm:$0xf]
  %v41 = vld [vmem:[%s1 + $0x3c] sm:$0xf]
  %v44 = vunpack.c.l.b16 %v24
  %v45 = vunpack.c.l.b16 %v25
  %v46 = vpack.c.b16 %v45, %v44
  %v64 = vunpack.c.l.b16 %v26
  %v65 = vunpack.c.l.b16 %v27
  %v66 = vunpack.c.l.b16 %v28
  %v67 = vunpack.c.l.b16 %v29
  %v68 = vunpack.c.l.b16 %v30
  %v69 = vunpack.c.l.b16 %v31
  %v70 = vunpack.c.l.b16 %v32
  %v71 = vunpack.c.l.b16 %v33
  %v72 = vunpack.c.l.b16 %v34
  %v73 = vunpack.c.l.b16 %v35
  %v74 = vunpack.c.l.b16 %v36
  %v75 = vunpack.c.l.b16 %v37
  %v76 = vunpack.c.l.b16 %v38
  %v77 = vunpack.c.l.b16 %v39
  %v78 = vunpack.c.l.b16 %v40
  %v79 = vunpack.c.l.b16 %v41
  %v80 = vpack.c.b16 %v65, %v64
  %v81 = vpack.c.b16 %v67, %v66
  %v82 = vpack.c.b16 %v69, %v68
  %v83 = vpack.c.b16 %v71, %v70
  %v84 = vpack.c.b16 %v73, %v72
  %v85 = vpack.c.b16 %v75, %v74
  %v86 = vpack.c.b16 %v77, %v76
  %v87 = vpack.c.b16 %v79, %v78
  %96 = vmatprep.subr.bf16.mxu0 0
  %97 = vmatpush1.bf16.msra.mxu0 %v80
  %98 = vmatprep.subr.bf16.mxu0 0
  %99 = vmatpush1.bf16.msra.mxu0 %v81
  %100 = vmatprep.subr.bf16.mxu0 0
  %101 = vmatpush1.bf16.msra.mxu0 %v82
  %102 = vmatprep.subr.bf16.mxu0 0
  %103 = vmatpush1.bf16.msra.mxu0 %v83
  %104 = vmatprep.subr.bf16.mxu0 0
  %105 = vmatpush1.bf16.msra.mxu0 %v84
  %106 = vmatprep.subr.bf16.mxu0 0
  %107 = vmatpush1.bf16.msra.mxu0 %v85
  %108 = vmatprep.subr.bf16.mxu0 0
  %109 = vmatpush1.bf16.msra.mxu0 %v86
  %110 = vmatprep.subr.bf16.mxu0 0
  %111 = vmatpush1.bf16.msra.mxu0 %v87
  %112 = vmatprep.subr.bf16.mxu0 0
  %113 = vmatpush1.bf16.msra.mxu0 0
  %114 = vmatprep.subr.bf16.mxu0 0
  %115 = vmatpush1.bf16.msra.mxu0 0
  %116 = vmatprep.subr.bf16.mxu0 0
  %117 = vmatpush1.bf16.msra.mxu0 0
  %118 = vmatprep.subr.bf16.mxu0 0
  %119 = vmatpush1.bf16.msra.mxu0 0
  %120 = vmatprep.subr.bf16.mxu0 0
  %121 = vmatpush1.bf16.msra.mxu0 0
  %122 = vmatprep.subr.bf16.mxu0 0
  %123 = vmatpush1.bf16.msra.mxu0 0
  %124 = vmatprep.subr.bf16.mxu0 0
  %125 = vmatpush1.bf16.msra.mxu0 0
  %126 = vmatprep.subr.bf16.mxu0 0
  %127 = vmatpush1.bf16.msra.mxu0 0
  %128 = vmatprep.mubr.bf16.mxu0 0
  %129 = vmatmul.mubr.bf16.gmra.mrb[0].mxu0 %v46
  %v130 = vpop.f32.mrb[0].mxu0
  %v131 = vadd.f32 0.0, %v130
  %v132 = vpop.f32.mrb[0].mxu0
  %v133 = vpop.f32.mrb[0].mxu0
  %v134 = vadd.f32 0.0, %v133
  %v135 = vpop.f32.mrb[0].mxu0
  %136 = vdwg.mxu0
  %v137 = vtanh.pop %v131
  %v138 = vtanh.pop %v134
  %v139 = vrot.slane %v137, 4
  %v140 = vadd.f32 %v137, %v139
  %v141 = vrot.slane %v140, 2
  %v142 = vadd.f32 %v140, %v141
  %v143 = vrot.slane %v142, 1
  %v144 = vadd.f32 %v142, %v143
  %v145 = vrot.slane %v138, 4
  %v146 = vadd.f32 %v138, %v145
  %v147 = vrot.slane %v146, 2
  %v148 = vadd.f32 %v146, %v147
  %v149 = vrot.slane %v148, 1
  %v150 = vadd.f32 %v148, %v149
  %v151 = vrcp.pop 8.0
  %v152 = vmul.f32 %v144, %v151
  %v153 = vmul.f32 %v150, %v151
  %v154 = vld [vmem:[%s2] sm:$0xff]
  %v155 = vld [vmem:[%s2 + $0x8] sm:$0xff]
  %v156 = vadd.f32 %v154, %v152
  %v157 = vadd.f32 %v155, %v153
  %v158 = vpack.c.bf16 %v157, %v156
  %159 = vst [vmem:[#allocation2] sm:$0xff] %v158
  %v160 = vld [vmem:[#allocation2] sm:$0xff]
  %v161 = vld [vmem:[%s3] sm:$0xf]
  %v162 = vld [vmem:[%s3 + $0x4] sm:$0xf]
  %v163 = vld [vmem:[%s3 + $0x8] sm:$0xf]
  %v164 = vld [vmem:[%s3 + $0xc] sm:$0xf]
  %v165 = vld [vmem:[%s3 + $0x10] sm:$0xf]
  %v166 = vld [vmem:[%s3 + $0x14] sm:$0xf]
  %v167 = vld [vmem:[%s3 + $0x18] sm:$0xf]
  %v168 = vld [vmem:[%s3 + $0x1c] sm:$0xf]
  %v169 = vld [vmem:[%s3 + $0x20] sm:$0xf]
  %v170 = vld [vmem:[%s3 + $0x24] sm:$0xf]
  %v171 = vld [vmem:[%s3 + $0x28] sm:$0xf]
  %v172 = vld [vmem:[%s3 + $0x2c] sm:$0xf]
  %v173 = vld [vmem:[%s3 + $0x30] sm:$0xf]
  %v174 = vld [vmem:[%s3 + $0x34] sm:$0xf]
  %v175 = vld [vmem:[%s3 + $0x38] sm:$0xf]
  %v176 = vld [vmem:[%s3 + $0x3c] sm:$0xf]
  %v193 = vunpack.c.l.b16 %v161
  %v194 = vunpack.c.l.b16 %v162
  %v195 = vunpack.c.l.b16 %v163
  %v196 = vunpack.c.l.b16 %v164
  %v197 = vunpack.c.l.b16 %v165
  %v198 = vunpack.c.l.b16 %v166
  %v199 = vunpack.c.l.b16 %v167
  %v200 = vunpack.c.l.b16 %v168
  %v201 = vunpack.c.l.b16 %v169
  %v202 = vunpack.c.l.b16 %v170
  %v203 = vunpack.c.l.b16 %v171
  %v204 = vunpack.c.l.b16 %v172
  %v205 = vunpack.c.l.b16 %v173
  %v206 = vunpack.c.l.b16 %v174
  %v207 = vunpack.c.l.b16 %v175
  %v208 = vunpack.c.l.b16 %v176
  %v209 = vpack.c.b16 %v194, %v193
  %v210 = vpack.c.b16 %v196, %v195
  %v211 = vpack.c.b16 %v198, %v197
  %v212 = vpack.c.b16 %v200, %v199
  %v213 = vpack.c.b16 %v202, %v201
  %v214 = vpack.c.b16 %v204, %v203
  %v215 = vpack.c.b16 %v206, %v205
  %v216 = vpack.c.b16 %v208, %v207
  %225 = vmatprep.subr.bf16.mxu0 0
  %226 = vmatpush1.bf16.msra.mxu0 %v209
  %227 = vmatprep.subr.bf16.mxu0 0
  %228 = vmatpush1.bf16.msra.mxu0 %v210
  %229 = vmatprep.subr.bf16.mxu0 0
  %230 = vmatpush1.bf16.msra.mxu0 %v211
  %231 = vmatprep.subr.bf16.mxu0 0
  %232 = vmatpush1.bf16.msra.mxu0 %v212
  %233 = vmatprep.subr.bf16.mxu0 0
  %234 = vmatpush1.bf16.msra.mxu0 %v213
  %235 = vmatprep.subr.bf16.mxu0 0
  %236 = vmatpush1.bf16.msra.mxu0 %v214
  %237 = vmatprep.subr.bf16.mxu0 0
  %238 = vmatpush1.bf16.msra.mxu0 %v215
  %239 = vmatprep.subr.bf16.mxu0 0
  %240 = vmatpush1.bf16.msra.mxu0 %v216
  %241 = vmatprep.subr.bf16.mxu0 0
  %242 = vmatpush1.bf16.msra.mxu0 0
  %243 = vmatprep.subr.bf16.mxu0 0
  %244 = vmatpush1.bf16.msra.mxu0 0
  %245 = vmatprep.subr.bf16.mxu0 0
  %246 = vmatpush1.bf16.msra.mxu0 0
  %247 = vmatprep.subr.bf16.mxu0 0
  %248 = vmatpush1.bf16.msra.mxu0 0
  %249 = vmatprep.subr.bf16.mxu0 0
  %250 = vmatpush1.bf16.msra.mxu0 0
  %251 = vmatprep.subr.bf16.mxu0 0
  %252 = vmatpush1.bf16.msra.mxu0 0
  %253 = vmatprep.subr.bf16.mxu0 0
  %254 = vmatpush1.bf16.msra.mxu0 0
  %255 = vmatprep.subr.bf16.mxu0 0
  %256 = vmatpush1.bf16.msra.mxu0 0
  %257 = vmatprep.mubr.bf16.mxu0 0
  %258 = vmatmul.mubr.bf16.gmra.mrb[0].mxu0 %v160
  %v259 = vpop.f32.mrb[0].mxu0
  %v260 = vadd.f32 0.0, %v259
  %v261 = vpop.f32.mrb[0].mxu0
  %v262 = vpop.f32.mrb[0].mxu0
  %v263 = vadd.f32 0.0, %v262
  %v264 = vpop.f32.mrb[0].mxu0
  %265 = vdwg.mxu0
  %v266 = vtanh.pop %v260
  %v267 = vtanh.pop %v263
  %v268 = vpack.c.bf16 %v267, %v266
  %269 = vst [vmem:[#allocation2 + $0x8] sm:$0xff] %v268
  %v270 = vld [vmem:[#allocation2] sm:$0xff]
  %v271 = vld [vmem:[#allocation2 + $0x8] sm:$0xff]
  %v272 = vld [vmem:[%s4] sm:$0xf]
  %v273 = vld [vmem:[%s4 + $0x4] sm:$0xf]
  %v274 = vld [vmem:[%s4 + $0x8] sm:$0xf]
  %v275 = vld [vmem:[%s4 + $0xc] sm:$0xf]
  %v276 = vld [vmem:[%s4 + $0x10] sm:$0xf]
  %v277 = vld [vmem:[%s4 + $0x14] sm:$0xf]
  %v278 = vld [vmem:[%s4 + $0x18] sm:$0xf]
  %v279 = vld [vmem:[%s4 + $0x1c] sm:$0xf]
  %v280 = vld [vmem:[%s4 + $0x20] sm:$0xf]
  %v281 = vld [vmem:[%s4 + $0x24] sm:$0xf]
  %v282 = vld [vmem:[%s4 + $0x28] sm:$0xf]
  %v283 = vld [vmem:[%s4 + $0x2c] sm:$0xf]
  %v284 = vld [vmem:[%s4 + $0x30] sm:$0xf]
  %v285 = vld [vmem:[%s4 + $0x34] sm:$0xf]
  %v286 = vld [vmem:[%s4 + $0x38] sm:$0xf]
  %v287 = vld [vmem:[%s4 + $0x3c] sm:$0xf]
  %v288 = vld [vmem:[%s5] sm:$0x1]
  %v290 = vlaneseq
  %v291 = vshrl.u32 %v290, 7
  %v292 = vsub.s32 0, %v291
  %v293 = vrot.slane %v288, %v292
  %v311 = vunpack.c.l.b16 %v272
  %v312 = vunpack.c.l.b16 %v273
  %v313 = vunpack.c.l.b16 %v274
  %v314 = vunpack.c.l.b16 %v275
  %v315 = vunpack.c.l.b16 %v276
  %v316 = vunpack.c.l.b16 %v277
  %v317 = vunpack.c.l.b16 %v278
  %v318 = vunpack.c.l.b16 %v279
  %v319 = vunpack.c.l.b16 %v280
  %v320 = vunpack.c.l.b16 %v281
  %v321 = vunpack.c.l.b16 %v282
  %v322 = vunpack.c.l.b16 %v283
  %v323 = vunpack.c.l.b16 %v284
  %v324 = vunpack.c.l.b16 %v285
  %v325 = vunpack.c.l.b16 %v286
  %v326 = vunpack.c.l.b16 %v287
  %v327 = vpack.c.b16 %v312, %v311
  %v328 = vpack.c.b16 %v314, %v313
  %v329 = vpack.c.b16 %v316, %v315
  %v330 = vpack.c.b16 %v318, %v317
  %v331 = vpack.c.b16 %v320, %v319
  %v332 = vpack.c.b16 %v322, %v321
  %v333 = vpack.c.b16 %v324, %v323
  %v334 = vpack.c.b16 %v326, %v325
  %343 = vmatprep.subr.bf16.mxu0 0
  %344 = vmatpush1.bf16.msra.mxu0 %v327
  %345 = vmatprep.subr.bf16.mxu0 0
  %346 = vmatpush1.bf16.msra.mxu0 %v328
  %347 = vmatprep.subr.bf16.mxu0 0
  %348 = vmatpush1.bf16.msra.mxu0 %v329
  %349 = vmatprep.subr.bf16.mxu0 0
  %350 = vmatpush1.bf16.msra.mxu0 %v330
  %351 = vmatprep.subr.bf16.mxu0 0
  %352 = vmatpush1.bf16.msra.mxu0 %v331
  %353 = vmatprep.subr.bf16.mxu0 0
  %354 = vmatpush1.bf16.msra.mxu0 %v332
  %355 = vmatprep.subr.bf16.mxu0 0
  %356 = vmatpush1.bf16.msra.mxu0 %v333
  %357 = vmatprep.subr.bf16.mxu0 0
  %358 = vmatpush1.bf16.msra.mxu0 %v334
  %359 = vmatprep.subr.bf16.mxu0 0
  %360 = vmatpush1.bf16.msra.mxu0 0
  %361 = vmatprep.subr.bf16.mxu0 0
  %362 = vmatpush1.bf16.msra.mxu0 0
  %363 = vmatprep.subr.bf16.mxu0 0
  %364 = vmatpush1.bf16.msra.mxu0 0
  %365 = vmatprep.subr.bf16.mxu0 0
  %366 = vmatpush1.bf16.msra.mxu0 0
  %367 = vmatprep.subr.bf16.mxu0 0
  %368 = vmatpush1.bf16.msra.mxu0 0
  %369 = vmatprep.subr.bf16.mxu0 0
  %370 = vmatpush1.bf16.msra.mxu0 0
  %371 = vmatprep.subr.bf16.mxu0 0
  %372 = vmatpush1.bf16.msra.mxu0 0
  %373 = vmatprep.subr.bf16.mxu0 0
  %374 = vmatpush1.bf16.msra.mxu0 0
  %375 = vmatprep.mubr.bf16.mxu0 0
  %376 = vmatmul.mubr.bf16.gmra.mrb[0].mxu0 %v270
  %v377 = vpop.f32.mrb[0].mxu0
  %v378 = vadd.f32 %v293, %v377
  %v379 = vpop.f32.mrb[0].mxu0
  %v380 = vpop.f32.mrb[0].mxu0
  %v381 = vadd.f32 %v293, %v380
  %v382 = vpop.f32.mrb[0].mxu0
  %383 = vmatprep.mubr.bf16.mxu0 0
  %384 = vmatmul.mubr.bf16.gmra.mrb[0].mxu0 %v271
  %v385 = vpop.f32.mrb[0].mxu0
  %v386 = vadd.f32 %v293, %v385
  %v387 = vpop.f32.mrb[0].mxu0
  %v388 = vpop.f32.mrb[0].mxu0
  %v389 = vadd.f32 %v293, %v388
  %v390 = vpop.f32.mrb[0].mxu0
  %391 = vdwg.mxu0
  %392 = vmax.xlane.f32.xlu0 %v378
  %v393 = vpop.xlane.xlu0 %392
  %394 = vmax.xlane.f32.xlu0 %v381
  %v395 = vpop.xlane.xlu0 %394
  %396 = vmax.xlane.f32.xlu0 %v386
  %v397 = vpop.xlane.xlu0 %396
  %398 = vmax.xlane.f32.xlu0 %v389
  %v399 = vpop.xlane.xlu0 %398
  %v400 = vsub.f32 %v378, %v393
  %v401 = vsub.f32 %v381, %v395
  %v402 = vsub.f32 %v386, %v397
  %v403 = vsub.f32 %v389, %v399
  %v404 = vmul.f32 %v400, 1.442695
  %v405 = vpow.pop %v404
  %v406 = vmul.f32 %v401, 1.442695
  %v407 = vpow.pop %v406
  %v408 = vmul.f32 %v402, 1.442695
  %v409 = vpow.pop %v408
  %v410 = vmul.f32 %v403, 1.442695
  %v411 = vpow.pop %v410
  %412 = vadd.xlane.f32.xlu0 %v405
  %v413 = vpop.xlane.xlu0 %412
  %414 = vadd.xlane.f32.xlu0 %v407
  %v415 = vpop.xlane.xlu0 %414
  %416 = vadd.xlane.f32.xlu0 %v409
  %v417 = vpop.xlane.xlu0 %416
  %418 = vadd.xlane.f32.xlu0 %v411
  %v419 = vpop.xlane.xlu0 %418
  %v420 = vlog2.pop %v413
  %v421 = vmul.f32 %v420, 0.6931472
  %v422 = vlog2.pop %v415
  %v423 = vmul.f32 %v422, 0.6931472
  %v424 = vlog2.pop %v417
  %v425 = vmul.f32 %v424, 0.6931472
  %v426 = vlog2.pop %v419
  %v427 = vmul.f32 %v426, 0.6931472
  %v428 = vsub.f32 %v400, %v421
  %v429 = vsub.f32 %v401, %v423
  %v430 = vsub.f32 %v402, %v425
  %v431 = vsub.f32 %v403, %v427
  %432 = vst [vmem:[%s6] sm:$0xff] %v428
  %433 = vst [vmem:[%s6 + $0x8] sm:$0xff] %v429
  %434 = vst [vmem:[%s6 + $0x10] sm:$0xff] %v430
  %435 = vst [vmem:[%s6 + $0x18] sm:$0xff] %v431
  // Predicated region
  $region26: #{mran_forward.1} parent=0 // pred_check
    _
  $region27: #{mran_forward.1} parent=0 // pred_check_branch
    %437 = sbr.rel (0) target = $region29
  $region28: #{mran_forward.1} parent=0 // pred_region
    _
  $region29: #{mran_forward.1} parent=0 // pred_fallthru
    _
  // Predicated region
  $region30: #{mran_forward.1} parent=0 // pred_check
    _
  $region31: #{mran_forward.1} parent=0 // pred_check_branch
    %439 = sbr.rel (0) target = $region33
  $region32: #{mran_forward.1} parent=0 // pred_region
    _
  $region33: #{mran_forward.1} parent=0 // pred_fallthru
    _

</llo_original>
